<compile_context>
chip_gen: v6e
topology: v6e:2x2x1
jax: 0.10.0
libtpu: 0.0.40
codegen_flags: <defaults>
</compile_context>

<pallas_src>
import functools

import jax
import jax.numpy as jnp
from jax.experimental import pallas as pl
from jax.experimental.pallas import tpu as pltpu

LANE = 128


def _round_up(n, m):
    return ((n + m - 1) // m) * m


def _choose_block_b(batch, cap=4096):
    """VMEM-budgeted batch tile.

    * cap=4096 rows keeps (input + f32 output) tiles x 2 buffers under ~5 MiB, which
      fits every generation's scoped VMEM (incl. v7x's 64 MiB physical).
    * For batch > 32 we force >= 2 grid steps (multiple-of-16 tile) so the "parallel"
      batch axis can be sharded across v7x's two TensorCores and DMA/compute overlap.
    """
    if batch <= 32:
        return batch                      # block == full dim -> always a legal BlockSpec
    half = (batch + 1) // 2
    bb = ((half + 15) // 16) * 16         # multiple of 16 (bf16 sublane tile)
    return max(16, min(bb, cap))


def actor_critic_kernel(x_ref, w1_ref, b1_ref, w2_ref, out_ref):
    # x_ref : (block_b, I)      input rows (any float dtype; cast to bf16 for the MXU)
    # w1_ref: (I, D_hid) bf16   columns [0:H] actor fc1, [H:2H] critic fc1, rest 0
    # b1_ref: (1, D_hid) f32    fused layer-1 biases; lane 2H holds 1.0
    # w2_ref: (D_hid, D_out) bf16  block-diag fc2 weights; row 2H holds the fc2 biases
    # out_ref: (block_b, D_out) f32  lanes [0:O] action_pred, lane O value_pred, rest 0
    x = x_ref[...].astype(jnp.bfloat16)

    # fused layer 1 (actor + critic): one MXU matmul, f32 accumulation
    h = jnp.dot(x, w1_ref[...], preferred_element_type=jnp.float32)
    h = jnp.maximum(h + b1_ref[...], 0.0)          # bias + ReLU (dropout = identity, eval)
    h = h.astype(jnp.bfloat16)                     # keep the second matmul on the bf16 MXU path

    # fused layer 2 (block-diagonal) with biases folded into row 2H (h[:, 2H] == 1)
    out_ref[...] = jnp.dot(h, w2_ref[...],
                           preferred_element_type=jnp.float32).astype(out_ref.dtype)


def pack_params(params, input_dim, hidden_dim, output_dim):
    """Pack the 8 weight/bias arrays into (w1, b1, w2), lane-padded per array (done once).

    Returns:
      w1: (I, D_hid)    bf16
      b1: (1, D_hid)    f32   (b1[0, 2H] = 1.0 -> carries layer-2 biases through ReLU)
      w2: (D_hid, D_out) bf16 (row 2H = fused layer-2 biases)
    """
    I, H, O = input_dim, hidden_dim, output_dim
    d_hid = _round_up(2 * H + 1, LANE)
    d_out = _round_up(O + 1, LANE)

    w1 = jnp.zeros((I, d_hid), jnp.float32)
    w1 = w1.at[:, :H].set(params["w1a"])
    w1 = w1.at[:, H:2 * H].set(params["w1c"])

    b1 = jnp.zeros((1, d_hid), jnp.float32)
    b1 = b1.at[0, :H].set(params["b1a"].reshape(-1))
    b1 = b1.at[0, H:2 * H].set(params["b1c"].reshape(-1))
    b1 = b1.at[0, 2 * H].set(1.0)     # lane 2H -> 1 after ReLU (w1 column 2H is zero)

    w2 = jnp.zeros((d_hid, d_out), jnp.float32)
    w2 = w2.at[:H, :O].set(params["w2a"])
    w2 = w2.at[H:2 * H, O].set(params["w2c"].reshape(-1))
    w2 = w2.at[2 * H, :O].set(params["b2a"].reshape(-1))
    w2 = w2.at[2 * H, O].set(params["b2c"][0, 0])

    return (w1.astype(jnp.bfloat16), b1, w2.astype(jnp.bfloat16))


def actor_critic_forward(x, packed, *, output_dim):
    """x: (B, INPUT_DIM) float; packed: (w1, b1, w2) from pack_params.
    Returns (action_pred (B, O), value_pred (B, 1))."""
    w1, b1, w2 = packed
    B, I = x.shape
    d_hid = w1.shape[1]
    d_out = w2.shape[1]

    block_b = _choose_block_b(B)
    grid = (pl.cdiv(B, block_b),)      # ragged last block handled by Pallas

    out = pl.pallas_call(
        actor_critic_kernel,
        out_shape=jax.ShapeDtypeStruct((B, d_out), jnp.float32),
        grid=grid,
        in_specs=[
            pl.BlockSpec((block_b, I), lambda i: (i, 0)),       # batch-tiled activations
            # params use constant index_maps -> fetched once, VMEM-resident across tiles
            # (double-buffer waste is ~72 KiB at these sizes; negligible).
            pl.BlockSpec((I, d_hid), lambda i: (0, 0)),
            pl.BlockSpec((1, d_hid), lambda i: (0, 0)),
            pl.BlockSpec((d_hid, d_out), lambda i: (0, 0)),
        ],
        out_specs=pl.BlockSpec((block_b, d_out), lambda i: (i, 0)),
        compiler_params=pltpu.CompilerParams(
            dimension_semantics=("parallel",),                  # megacore batch sharding
            vmem_limit_bytes=32 * 1024 * 1024,                  # safe on v5e/v6e/v7x
        ),
    )(x, w1, b1, w2)

    # Slices fuse with the pallas_call consumer when the whole forward is under one jit.
    action_pred = out[:, :output_dim]
    value_pred = out[:, output_dim:output_dim + 1]
    return action_pred, value_pred


def make_params(key, input_dim, hidden_dim, output_dim):
    """Deterministic xavier_normal_ weights + zero biases (matches init_weights)."""
    def xavier(k, fan_in, fan_out):
        std = (2.0 / (fan_in + fan_out)) ** 0.5
        return std * jax.random.normal(k, (fan_in, fan_out), dtype=jnp.float32)

    k1, k2, k3, k4 = jax.random.split(key, 4)
    return {
        "w1a": xavier(k1, input_dim, hidden_dim),
        "b1a": jnp.zeros((1, hidden_dim), jnp.float32),
        "w2a": xavier(k2, hidden_dim, output_dim),
        "b2a": jnp.zeros((1, output_dim), jnp.float32),
        "w1c": xavier(k3, input_dim, hidden_dim),
        "b1c": jnp.zeros((1, hidden_dim), jnp.float32),
        "w2c": xavier(k4, hidden_dim, 1),
        "b2c": jnp.zeros((1, 1), jnp.float32),
    }


if __name__ == "__main__":
    INPUT_DIM, HIDDEN_DIM, OUTPUT_DIM = 16, 32, 4
    B = 8

    key = jax.random.PRNGKey(0)
    kx, kp = jax.random.split(key)
    x = jax.random.normal(kx, (B, INPUT_DIM), dtype=jnp.float32)
    params = make_params(kp, INPUT_DIM, HIDDEN_DIM, OUTPUT_DIM)

    packed = pack_params(params, INPUT_DIM, HIDDEN_DIM, OUTPUT_DIM)   # done once at init
    fwd = jax.jit(functools.partial(actor_critic_forward, output_dim=OUTPUT_DIM))
    action_pred, value_pred = fwd(x, packed)
    jax.block_until_ready((action_pred, value_pred))

    # pure-JAX f32 reference (original un-fused math, highest precision matmuls);
    # tolerance loosened for the bf16 MXU path.
    hp = jax.lax.Precision.HIGHEST
    ref_ha = jnp.maximum(jnp.dot(x, params["w1a"], precision=hp) + params["b1a"], 0.0)
    ref_act = jnp.dot(ref_ha, params["w2a"], precision=hp) + params["b2a"]
    ref_hc = jnp.maximum(jnp.dot(x, params["w1c"], precision=hp) + params["b1c"], 0.0)
    ref_val = jnp.dot(ref_hc, params["w2c"], precision=hp) + params["b2c"]

    assert action_pred.shape == (B, OUTPUT_DIM) and value_pred.shape == (B, 1)
    assert jnp.allclose(action_pred, ref_act, atol=3e-2, rtol=3e-2)
    assert jnp.allclose(value_pred, ref_val, atol=3e-2, rtol=3e-2)

    print("KERNEL_OK")
</pallas_src>

<mosaic_0001>
module attributes {stable_mosaic.version = 11 : i64} {
  func.func @actor_critic_kernel(%arg0: i32, %arg1: memref<8x16xf32, #tpu.memory_space<vmem>>, %arg2: memref<16x128xbf16, #tpu.memory_space<vmem>>, %arg3: memref<1x128xf32, #tpu.memory_space<vmem>>, %arg4: memref<128x128xbf16, #tpu.memory_space<vmem>>, %arg5: memref<8x128xf32, #tpu.memory_space<vmem>>) attributes {dimension_semantics = [#tpu.dimension_semantics<parallel>], iteration_bounds = array<i64: 1>, scalar_prefetch = 0 : i64, scratch_operands = 0 : i64, tpu.core_type = #tpu.core_type<tc>, window_params = [{transform_indices = @transform_0, window_bounds = array<i64: 8, 16>}, {pipeline_mode = #tpu.pipeline_mode<synchronous>, transform_indices = @transform_1, window_bounds = array<i64: 16, 128>}, {pipeline_mode = #tpu.pipeline_mode<synchronous>, transform_indices = @transform_2, window_bounds = array<i64: 1, 128>}, {pipeline_mode = #tpu.pipeline_mode<synchronous>, transform_indices = @transform_3, window_bounds = array<i64: 128, 128>}, {transform_indices = @transform_4, window_bounds = array<i64: 8, 128>}]} {
    %c0 = arith.constant 0 : index
    %c0_0 = arith.constant 0 : index
    %0 = vector.load %arg1[%c0, %c0_0] : memref<8x16xf32, #tpu.memory_space<vmem>>, vector<8x16xf32>
    %1 = arith.truncf %0 : vector<8x16xf32> to vector<8x16xbf16>
    %c0_1 = arith.constant 0 : index
    %c0_2 = arith.constant 0 : index
    %2 = vector.load %arg2[%c0_1, %c0_2] : memref<16x128xbf16, #tpu.memory_space<vmem>>, vector<16x128xbf16>
    %cst = arith.constant dense<0.000000e+00> : vector<8x128xf32>
    %3 = tpu.matmul %1, %2, %cst {dimension_numbers = #tpu.dot_dimension_numbers<[1], [0], [0], [1], [0, 0, 1, 1], [], []>} : vector<8x16xbf16>, vector<16x128xbf16>, vector<8x128xf32> -> vector<8x128xf32>
    %c0_3 = arith.constant 0 : index
    %c0_4 = arith.constant 0 : index
    %4 = vector.load %arg3[%c0_3, %c0_4] : memref<1x128xf32, #tpu.memory_space<vmem>>, vector<1x128xf32>
    %5 = vector.broadcast %4 : vector<1x128xf32> to vector<8x128xf32>
    %6 = arith.addf %3, %5 : vector<8x128xf32>
    %cst_5 = arith.constant 0.000000e+00 : f32
    %7 = vector.broadcast %cst_5 : f32 to vector<8x128xf32>
    %8 = arith.maximumf %6, %7 : vector<8x128xf32>
    %9 = arith.truncf %8 : vector<8x128xf32> to vector<8x128xbf16>
    %c0_6 = arith.constant 0 : index
    %c0_7 = arith.constant 0 : index
    %10 = vector.load %arg4[%c0_6, %c0_7] : memref<128x128xbf16, #tpu.memory_space<vmem>>, vector<128x128xbf16>
    %cst_8 = arith.constant dense<0.000000e+00> : vector<8x128xf32>
    %11 = tpu.matmul %9, %10, %cst_8 {dimension_numbers = #tpu.dot_dimension_numbers<[1], [0], [0], [1], [0, 0, 1, 1], [], []>} : vector<8x128xbf16>, vector<128x128xbf16>, vector<8x128xf32> -> vector<8x128xf32>
    %c0_9 = arith.constant 0 : index
    %c0_10 = arith.constant 0 : index
    %12 = vector.load %arg5[%c0_9, %c0_10] : memref<8x128xf32, #tpu.memory_space<vmem>>, vector<8x128xf32>
    tpu.vector_store %arg5[%c0_9, %c0_10], %11 {strides = array<i32>} : memref<8x128xf32, #tpu.memory_space<vmem>>, vector<8x128xf32>,
    return
  }
  func.func @transform_0(%arg0: i32) -> (i32, i32) {
    %c0_i32 = arith.constant 0 : i32
    %c0_i32_0 = arith.constant 0 : i32
    return %arg0, %c0_i32 : i32, i32
  }
  func.func @transform_1(%arg0: i32) -> (i32, i32) {
    %c0_i32 = arith.constant 0 : i32
    %c0_i32_0 = arith.constant 0 : i32
    %c0_i32_1 = arith.constant 0 : i32
    return %c0_i32, %c0_i32_0 : i32, i32
  }
  func.func @transform_2(%arg0: i32) -> (i32, i32) {
    %c0_i32 = arith.constant 0 : i32
    %c0_i32_0 = arith.constant 0 : i32
    %c0_i32_1 = arith.constant 0 : i32
    return %c0_i32, %c0_i32_0 : i32, i32
  }
  func.func @transform_3(%arg0: i32) -> (i32, i32) {
    %c0_i32 = arith.constant 0 : i32
    %c0_i32_0 = arith.constant 0 : i32
    %c0_i32_1 = arith.constant 0 : i32
    return %c0_i32, %c0_i32_0 : i32, i32
  }
  func.func @transform_4(%arg0: i32) -> (i32, i32) {
    %c0_i32 = arith.constant 0 : i32
    %c0_i32_0 = arith.constant 0 : i32
    return %arg0, %c0_i32 : i32, i32
  }
}

</mosaic_0001>

<llo_original>
// kernel: actor_critic_forward.1
$region0: #{actor_critic_forward.1}
  #allocation0 [shape = 'u32[]', space=smem, size = 0x4, offset = 0x4, fixed_abs, tag = 'smem constant byte address 0x4 - core index']
  #allocation1 [shape = 'u32[144,128]{1,0:T(1,128)}', space=vmem, size = 0x12000, scoped, tag = 'internal scratch']
  %s0 = inlined_call_operand.hbm [shape: f32[8,16], index: 0, kind: input, shape index: {}]
  %s1 = inlined_call_operand.hbm [shape: bf16[16,128], index: 1, kind: input, shape index: {}]
  %s2 = inlined_call_operand.vmem [shape: f32[1,128], index: 2, kind: input, shape index: {}]
  %s3 = inlined_call_operand.hbm [shape: bf16[128,128], index: 3, kind: input, shape index: {}]
  %s4 = inlined_call_operand.vmem [shape: f32[8,128], index: 4, kind: output, shape index: {}]
  %s5 = sld [smem:[#allocation0]]
  $region38: #{actor_critic_forward.1} parent=0
    _
  %s7 = ssub.s32 1, %s5
  %s8 = scalar_select 0, %s7, %s5
  $region1: #{actor_critic_forward.1} parent=0
    #allocation2 [shape = 'u8[4096]{0}', space=vmem, size = 0x1000, scoped, tag = 'input window, operand 0, single buffered']
    #allocation3 [shape = 's32[1]{0}', space=sflag, size = 0x4, scoped, tag = 'scoped memory for actor_critic_forward.1']
    #allocation4 [shape = 'u8[4096]{0}', space=vmem, size = 0x1000, scoped, tag = 'input window, operand 1, single buffered']
    #allocation5 [shape = 's32[1]{0}', space=sflag, size = 0x4, scoped, tag = 'scoped memory for actor_critic_forward.1']
    #allocation6 [shape = 'u8[32768]{0}', space=vmem, size = 0x8000, scoped, tag = 'input window, operand 3, single buffered']
    %9 = vsyncpa [#allocation3], 0
    %10 = vsyncpa [#allocation5], 0
    // Predicated region
    $region2: #{actor_critic_forward.1} parent=1 // pred_check
      _
    $region3: #{actor_critic_forward.1} parent=1 // pred_check_branch
      %12 = sbr.rel (0) target = $region5
    $region4: #{actor_critic_forward.1} parent=1 // pred_region
      %s14 = ssub.s32 128, 128
      %15 = vsyncadd [#allocation3], %s14
      %s17 = sshll.u32 [#allocation2], 4
      %s18 = int_to_ptr.vmem [resolvable:$true] %s17
      %20 = dma.hbm_to_vmem [thread:$0]  %s0, 128, %s18, [#allocation3]
    $region5: #{actor_critic_forward.1} parent=1 // pred_fallthru
      _
    // Predicated region
    $region6: #{actor_critic_forward.1} parent=1 // pred_check
      _
    $region7: #{actor_critic_forward.1} parent=1 // pred_check_branch
      %22 = sbr.rel (0) target = $region9
    $region8: #{actor_critic_forward.1} parent=1 // pred_region
      %s24 = ssub.s32 128, 128
      %25 = vsyncadd [#allocation5], %s24
      %s26 = sshll.u32 [#allocation4], 4
      %s27 = int_to_ptr.vmem [resolvable:$true] %s26
      %32 = dma.hbm_to_vmem [thread:$0]  %s1, 128, %s27, [#allocation5], 64, 64, 4
    $region9: #{actor_critic_forward.1} parent=1 // pred_fallthru
      _
    // Predicated region
    $region10: #{actor_critic_forward.1} parent=1 // pred_check
      _
    $region11: #{actor_critic_forward.1} parent=1 // pred_check_branch
      %34 = sbr.rel (0) target = $region13
    $region12: #{actor_critic_forward.1} parent=1 // pred_region
      _
    $region13: #{actor_critic_forward.1} parent=1 // pred_fallthru
      _
    // Predicated region
    $region14: #{actor_critic_forward.1} parent=1 // pred_check
      _
    $region15: #{actor_critic_forward.1} parent=1 // pred_check_branch
      %36 = sbr.rel (0) target = $region17
    $region16: #{actor_critic_forward.1} parent=1 // pred_region
      %s38 = ssub.s32 1024, 1024
      %39 = vsyncadd [#allocation5], %s38
      %s40 = sshll.u32 [#allocation6], 4
      %s41 = int_to_ptr.vmem [resolvable:$true] %s40
      %46 = dma.hbm_to_vmem [thread:$0]  %s3, 1024, %s41, [#allocation5], 64, 64, 4
    $region17: #{actor_critic_forward.1} parent=1 // pred_fallthru
      _
    // Predicated region
    $region18: #{actor_critic_forward.1} parent=1 // pred_check
      _
    $region19: #{actor_critic_forward.1} parent=1 // pred_check_branch
      %48 = sbr.rel (0) target = $region21
    $region20: #{actor_critic_forward.1} parent=1 // pred_region
      %49 = dma.done [#allocation3], 128
    $region21: #{actor_critic_forward.1} parent=1 // pred_fallthru
      _
    // Predicated region
    $region22: #{actor_critic_forward.1} parent=1 // pred_check
      _
    $region23: #{actor_critic_forward.1} parent=1 // pred_check_branch
      %51 = sbr.rel (0) target = $region25
    $region24: #{actor_critic_forward.1} parent=1 // pred_region
      %52 = dma.done [#allocation5], 128
    $region25: #{actor_critic_forward.1} parent=1 // pred_fallthru
      _
    // Predicated region
    $region26: #{actor_critic_forward.1} parent=1 // pred_check
      _
    $region27: #{actor_critic_forward.1} parent=1 // pred_check_branch
      %54 = sbr.rel (0) target = $region29
    $region28: #{actor_critic_forward.1} parent=1 // pred_region
      %55 = dma.done [#allocation5], 1024
    $region29: #{actor_critic_forward.1} parent=1 // pred_fallthru
      _
    %v57 = vld [vmem:[#allocation2] sm:$0xff]
    %v58 = vpack.c.bf16 %v57, %v57
    %v59 = vld [vmem:[#allocation4] sm:$0xf]
    %v60 = vld [vmem:[#allocation4 + $0x4] sm:$0xf]
    %v61 = vld [vmem:[%s2] sm:$0x1]
    %v63 = vlaneseq
    %v64 = vshrl.u32 %v63, 7
    %v65 = vsub.s32 0, %v64
    %v66 = vrot.slane %v61, %v65
    %v70 = vunpack.c.l.b16 %v59
    %v71 = vunpack.c.l.b16 %v60
    %v72 = vpack.c.b16 %v71, %v70
    %vm74 = vcmask 130048
    %v76 = vsel %vm74, %v58, 0
    %78 = vmatprep.subr.bf16.mxu0 0
    %79 = vmatpush1.bf16.msra.mxu0 0
    %80 = vmatprep.subr.bf16.mxu0 0
    %81 = vmatpush1.bf16.msra.mxu0 0
    %82 = vmatprep.subr.bf16.mxu0 0
    %83 = vmatpush1.bf16.msra.mxu0 0
    %84 = vmatprep.subr.bf16.mxu0 0
    %85 = vmatpush1.bf16.msra.mxu0 0
    %86 = vmatprep.subr.bf16.mxu0 0
    %87 = vmatpush1.bf16.msra.mxu0 0
    %88 = vmatprep.subr.bf16.mxu0 0
    %89 = vmatpush1.bf16.msra.mxu0 0
    %90 = vmatprep.subr.bf16.mxu0 0
    %91 = vmatpush1.bf16.msra.mxu0 0
    %92 = vmatprep.subr.bf16.mxu0 0
    %93 = vmatpush1.bf16.msra.mxu0 %v72
    %94 = vmatprep.subr.bf16.mxu0 0
    %95 = vmatpush2.bf16.msra.mxu0 0
    %96 = vmatprep.subr.bf16.mxu0 0
    %97 = vmatpush2.bf16.msra.mxu0 0
    %98 = vmatprep.subr.bf16.mxu0 0
    %99 = vmatpush2.bf16.msra.mxu0 0
    %100 = vmatprep.subr.bf16.mxu0 0
    %101 = vmatpush2.bf16.msra.mxu0 0
    %102 = vmatprep.subr.bf16.mxu0 0
    %103 = vmatpush2.bf16.msra.mxu0 0
    %104 = vmatprep.subr.bf16.mxu0 0
    %105 = vmatpush2.bf16.msra.mxu0 0
    %106 = vmatprep.subr.bf16.mxu0 0
    %107 = vmatpush2.bf16.msra.mxu0 0
    %108 = vmatprep.subr.bf16.mxu0 0
    %109 = vmatpush2.bf16.msra.mxu0 0
    %110 = vmatprep.mubr.bf16.mxu0 0
    %111 = vmatmul.mubr.bf16.gmra.mxu0 %v76
    %v112 = vpop.f32.mrf.mxu0
    %v113 = vadd.f32 %v66, %v112
    %v114 = vpop.f32.mrf.mxu0
    %v115 = vpop.f32.mrf.mxu0
    %v116 = vpop.f32.mrf.mxu0
    %117 = vdwg.mxu0
    %v118 = vmax.f32 %v113, 0.0
    %v119 = vpack.c.bf16 %v118, %v118
    %v120 = vld [vmem:[#allocation6] sm:$0xf]
    %v121 = vld [vmem:[#allocation6 + $0x4] sm:$0xf]
    %v122 = vld [vmem:[#allocation6 + $0x8] sm:$0xf]
    %v123 = vld [vmem:[#allocation6 + $0xc] sm:$0xf]
    %v124 = vld [vmem:[#allocation6 + $0x10] sm:$0xf]
    %v125 = vld [vmem:[#allocation6 + $0x14] sm:$0xf]
    %v126 = vld [vmem:[#allocation6 + $0x18] sm:$0xf]
    %v127 = vld [vmem:[#allocation6 + $0x1c] sm:$0xf]
    %v128 = vld [vmem:[#allocation6 + $0x20] sm:$0xf]
    %v129 = vld [vmem:[#allocation6 + $0x24] sm:$0xf]
    %v130 = vld [vmem:[#allocation6 + $0x28] sm:$0xf]
    %v131 = vld [vmem:[#allocation6 + $0x2c] sm:$0xf]
    %v132 = vld [vmem:[#allocation6 + $0x30] sm:$0xf]
    %v133 = vld [vmem:[#allocation6 + $0x34] sm:$0xf]
    %v134 = vld [vmem:[#allocation6 + $0x38] sm:$0xf]
    %v135 = vld [vmem:[#allocation6 + $0x3c] sm:$0xf]
    %v152 = vunpack.c.l.b16 %v120
    %v153 = vunpack.c.l.b16 %v121
    %v154 = vunpack.c.l.b16 %v122
    %v155 = vunpack.c.l.b16 %v123
    %v156 = vunpack.c.l.b16 %v124
    %v157 = vunpack.c.l.b16 %v125
    %v158 = vunpack.c.l.b16 %v126
    %v159 = vunpack.c.l.b16 %v127
    %v160 = vunpack.c.l.b16 %v128
    %v161 = vunpack.c.l.b16 %v129
    %v162 = vunpack.c.l.b16 %v130
    %v163 = vunpack.c.l.b16 %v131
    %v164 = vunpack.c.l.b16 %v132
    %v165 = vunpack.c.l.b16 %v133
    %v166 = vunpack.c.l.b16 %v134
    %v167 = vunpack.c.l.b16 %v135
    %v168 = vpack.c.b16 %v153, %v152
    %v169 = vpack.c.b16 %v155, %v154
    %v170 = vpack.c.b16 %v157, %v156
    %v171 = vpack.c.b16 %v159, %v158
    %v172 = vpack.c.b16 %v161, %v160
    %v173 = vpack.c.b16 %v163, %v162
    %v174 = vpack.c.b16 %v165, %v164
    %v175 = vpack.c.b16 %v167, %v166
    %184 = vmatprep.subr.bf16.mxu0 0
    %185 = vmatpush1.bf16.msra.mxu0 %v175
    %186 = vmatprep.subr.bf16.mxu0 0
    %187 = vmatpush1.bf16.msra.mxu0 %v174
    %188 = vmatprep.subr.bf16.mxu0 0
    %189 = vmatpush1.bf16.msra.mxu0 %v173
    %190 = vmatprep.subr.bf16.mxu0 0
    %191 = vmatpush1.bf16.msra.mxu0 %v172
    %192 = vmatprep.subr.bf16.mxu0 0
    %193 = vmatpush1.bf16.msra.mxu0 %v171
    %194 = vmatprep.subr.bf16.mxu0 0
    %195 = vmatpush1.bf16.msra.mxu0 %v170
    %196 = vmatprep.subr.bf16.mxu0 0
    %197 = vmatpush1.bf16.msra.mxu0 %v169
    %198 = vmatprep.subr.bf16.mxu0 0
    %199 = vmatpush1.bf16.msra.mxu0 %v168
    %200 = vmatprep.subr.bf16.mxu0 0
    %201 = vmatpush2.bf16.msra.mxu0 0
    %202 = vmatprep.subr.bf16.mxu0 0
    %203 = vmatpush2.bf16.msra.mxu0 0
    %204 = vmatprep.subr.bf16.mxu0 0
    %205 = vmatpush2.bf16.msra.mxu0 0
    %206 = vmatprep.subr.bf16.mxu0 0
    %207 = vmatpush2.bf16.msra.mxu0 0
    %208 = vmatprep.subr.bf16.mxu0 0
    %209 = vmatpush2.bf16.msra.mxu0 0
    %210 = vmatprep.subr.bf16.mxu0 0
    %211 = vmatpush2.bf16.msra.mxu0 0
    %212 = vmatprep.subr.bf16.mxu0 0
    %213 = vmatpush2.bf16.msra.mxu0 0
    %214 = vmatprep.subr.bf16.mxu0 0
    %215 = vmatpush2.bf16.msra.mxu0 0
    %216 = vmatprep.mubr.bf16.mxu0 0
    %217 = vmatmul.mubr.bf16.gmra.mxu0 %v119
    %v218 = vpop.f32.mrf.mxu0
    %v219 = vadd.f32 0.0, %v218
    %v220 = vpop.f32.mrf.mxu0
    %v221 = vpop.f32.mrf.mxu0
    %v222 = vpop.f32.mrf.mxu0
    %223 = vdwg.mxu0
    %224 = vst [vmem:[%s4] sm:$0xff] %v219
    // Predicated region
    $region30: #{actor_critic_forward.1} parent=1 // pred_check
      _
    $region31: #{actor_critic_forward.1} parent=1 // pred_check_branch
      %226 = sbr.rel (0) target = $region33
    $region32: #{actor_critic_forward.1} parent=1 // pred_region
      _
    $region33: #{actor_critic_forward.1} parent=1 // pred_fallthru
      _
    // Predicated region
    $region34: #{actor_critic_forward.1} parent=1 // pred_check
      _
    $region35: #{actor_critic_forward.1} parent=1 // pred_check_branch
      %228 = sbr.rel (0) target = $region37
    $region36: #{actor_critic_forward.1} parent=1 // pred_region
      _
    $region37: #{actor_critic_forward.1} parent=1 // pred_fallthru
      _
    %229 = vsyncpa [#allocation3], 1
    %230 = vsyncpa [#allocation5], 1

</llo_original>
